<compile_context>
chip_gen: v7x
topology: tpu7x:2x2x1
jax: 0.10.0
libtpu: 0.0.40
codegen_flags: <defaults>
</compile_context>

<pallas_src>
import jax
import jax.numpy as jnp
from jax import lax
from jax.experimental import pallas as pl
from jax.experimental.pallas import tpu as pltpu


def _round_up(x, m):
    return ((x + m - 1) // m) * m


def _wx_shift_relu_kernel(w_ref, x_ref, shift_ref, o_ref):
    # w_ref:     (Rp, K)        BN-scaled weight rows (bf16/f32), VMEM-resident
    # x_ref:     (1, K, tm)     input voxel tile (bf16/f32)
    # shift_ref: (Rp, 1)        BN shift (f32), broadcast along lanes
    # o_ref:     (1, Rp, tm)    lane-dense output (tm multiple of 128)
    acc = jnp.dot(w_ref[...], x_ref[0], preferred_element_type=jnp.float32)
    o_ref[0] = jnp.maximum(acc + shift_ref[...], 0.0).astype(o_ref.dtype)


def _fused_wxb_relu(W, X, shift, *, tm):
    """ReLU(W @ X[b] + shift) per batch.  W:(R,K), X:(B,K,M), shift:(R,1)."""
    R, K = W.shape
    B, _, M = X.shape

    # Sublane-dense rows (multiple of 8).
    Rp = _round_up(R, 8)
    if Rp != R:
        W = jnp.pad(W, ((0, Rp - R), (0, 0)))
        shift = jnp.pad(shift, ((0, Rp - R), (0, 0)))

    # Lane-dense voxel tiles: tile size multiple of 128, pad M to tile.
    tm_eff = min(_round_up(tm, 128), _round_up(M, 128))
    Mp = _round_up(M, tm_eff)
    if Mp != M:
        X = jnp.pad(X, ((0, 0), (0, 0), (0, Mp - M)))

    out = pl.pallas_call(
        _wx_shift_relu_kernel,
        out_shape=jax.ShapeDtypeStruct((B, Rp, Mp), jnp.float32),
        grid_spec=pltpu.PrefetchScalarGridSpec(
            num_scalar_prefetch=0,
            grid=(B, Mp // tm_eff),
            in_specs=[
                pl.BlockSpec((Rp, K), lambda b, i: (0, 0)),       # resident
                pl.BlockSpec((1, K, tm_eff), lambda b, i: (b, 0, i)),
                pl.BlockSpec((Rp, 1), lambda b, i: (0, 0)),       # resident
            ],
            out_specs=pl.BlockSpec((1, Rp, tm_eff), lambda b, i: (b, 0, i)),
        ),
        compiler_params=pltpu.CompilerParams(
            # No cross-iteration accumulator -> both axes shardable across the
            # two v7x TensorCores (no effect on single-TC v5e/v6e).
            dimension_semantics=("parallel", "parallel"),
            vmem_limit_bytes=64 * 1024 * 1024,
        ),
    )(W, X, shift)
    return out[:, :R, :M]


def basic_deconvolution_block(x, weight, gamma, beta, running_mean, running_var,
                              *, ks, stride, eps=1e-5, tm=512,
                              compute_dtype=jnp.bfloat16):
    """Transposed 3D conv (padding=0) + BatchNorm(eval) + ReLU.

    x:      (N, Cin, D, H, W)            float32
    weight: (Cin, Cout, ks, ks, ks)      float32  (ConvTranspose3d convention)
    returns (N, Cout, OD, OH, OW) with O* = (I*-1)*stride + ks
    """
    N, Cin, D, H, W = x.shape
    Cout = weight.shape[1]
    s = stride
    OD, OH, OW = (D - 1) * s + ks, (H - 1) * s + ks, (W - 1) * s + ks

    # Fused BatchNorm (eval) affine.
    scale = (gamma / jnp.sqrt(running_var + eps)).astype(jnp.float32)
    shift = (beta - running_mean * scale).astype(jnp.float32)

    if stride == ks:
        # ---- fast path: non-overlapping output blocks -> one dense matmul ----
        # y[n, cout, id*ks+kd, ih*ks+kh, iw*ks+kw]
        #   = sum_cin x[n,cin,id,ih,iw] * w[cin,cout,kd,kh,kw]
        X = x.reshape(N, Cin, D * H * W).astype(compute_dtype)   # no transpose
        # rows ordered (kd, kh, kw, cout)
        Wr = jnp.transpose(weight, (2, 3, 4, 1, 0)).reshape(ks ** 3 * Cout, Cin)
        scale_rows = jnp.tile(scale, ks ** 3)
        Wr = (Wr * scale_rows[:, None]).astype(compute_dtype)
        sh = jnp.tile(shift, ks ** 3).reshape(ks ** 3 * Cout, 1)

        out = _fused_wxb_relu(Wr, X, sh, tm=tm)                  # (N, R, DHW)
        out = out.reshape(N, ks, ks, ks, Cout, D, H, W)
        # single fused permutation: depth-to-space + channels-first
        out = jnp.transpose(out, (0, 4, 5, 1, 6, 2, 7, 3))
        return out.reshape(N, Cout, OD, OH, OW)

    # ---- general fallback: im2col of zero-inserted, padded input ----
    Dz, Hz, Wz = (D - 1) * s + 1, (H - 1) * s + 1, (W - 1) * s + 1
    xz = jnp.zeros((N, Cin, Dz, Hz, Wz), dtype=x.dtype)
    xz = xz.at[:, :, ::s, ::s, ::s].set(x)
    p = ks - 1
    xzp = jnp.pad(xz, ((0, 0), (0, 0), (p, p), (p, p), (p, p)))

    patches = []
    for kd in range(ks):
        for kh in range(ks):
            for kw in range(ks):
                patches.append(xzp[:, :, kd:kd + OD, kh:kh + OH, kw:kw + OW])
    patches = jnp.stack(patches, axis=0)          # (ks^3, N, Cin, OD, OH, OW)
    K = ks ** 3 * Cin
    M = N * OD * OH * OW
    Xg = jnp.transpose(patches, (0, 2, 1, 3, 4, 5)).reshape(1, K, M)
    Xg = Xg.astype(compute_dtype)

    # flipped kernel turns correlation into transposed convolution;
    # columns ordered (tap, cin) to match Xg rows.
    w_flip = weight[:, :, ::-1, ::-1, ::-1]                      # Cin,Cout,k,k,k
    Wg = jnp.transpose(w_flip, (1, 2, 3, 4, 0)).reshape(Cout, K)
    Wg = (Wg * scale[:, None]).astype(compute_dtype)
    sh = shift.reshape(Cout, 1)

    out = _fused_wxb_relu(Wg, Xg, sh, tm=tm)                     # (1, Cout, M)
    out = out.reshape(Cout, N, OD, OH, OW)
    return jnp.transpose(out, (1, 0, 2, 3, 4))                   # NCDHW


def _reference(x, weight, gamma, beta, running_mean, running_var, *, ks, stride,
               eps=1e-5):
    """Pure-JAX reference: ConvTranspose3d (padding=0) + BN(eval) + ReLU."""
    w_flip = jnp.transpose(weight[:, :, ::-1, ::-1, ::-1], (1, 0, 2, 3, 4))
    y = lax.conv_general_dilated(
        x, w_flip,
        window_strides=(1, 1, 1),
        padding=[(ks - 1, ks - 1)] * 3,
        lhs_dilation=(stride, stride, stride),
        dimension_numbers=("NCDHW", "OIDHW", "NCDHW"),
    )
    scale = gamma / jnp.sqrt(running_var + eps)
    shift = beta - running_mean * scale
    y = y * scale[None, :, None, None, None] + shift[None, :, None, None, None]
    return jnp.maximum(y, 0.0)


if __name__ == "__main__":
    key = jax.random.PRNGKey(0)
    k_x, k_w, k_w2 = jax.random.split(key, 3)

    # small shapes consistent with the module (MinkUNet deconv: ks=2, stride=2)
    N, Cin, Cout = 2, 4, 8
    D = H = W = 4
    ks, stride = 2, 2

    x = jax.random.normal(k_x, (N, Cin, D, H, W), dtype=jnp.float32)
    weight = 0.1 * jax.random.normal(k_w, (Cin, Cout, ks, ks, ks), dtype=jnp.float32)

    # deterministic BatchNorm parameters / running stats
    gamma = 0.5 + 0.05 * jnp.arange(Cout, dtype=jnp.float32)
    beta = 0.1 * jnp.arange(Cout, dtype=jnp.float32) - 0.2
    running_mean = 0.01 * jnp.arange(Cout, dtype=jnp.float32)
    running_var = 1.0 + 0.1 * jnp.arange(Cout, dtype=jnp.float32)

    ref = _reference(x, weight, gamma, beta, running_mean, running_var,
                     ks=ks, stride=stride)

    # 1) fast path (stride == ks), f32 operands: tight tolerance
    out_f32 = basic_deconvolution_block(
        x, weight, gamma, beta, running_mean, running_var,
        ks=ks, stride=stride, compute_dtype=jnp.float32)
    out_f32 = jax.block_until_ready(out_f32)
    assert out_f32.shape == (N, Cout, (D - 1) * stride + ks,
                             (H - 1) * stride + ks,
                             (W - 1) * stride + ks), out_f32.shape
    assert jnp.allclose(out_f32, ref, rtol=1e-4, atol=1e-4), float(
        jnp.max(jnp.abs(out_f32 - ref)))

    # 2) fast path, bf16 operands (default / perf config): relaxed tolerance
    out_bf16 = basic_deconvolution_block(
        x, weight, gamma, beta, running_mean, running_var,
        ks=ks, stride=stride, compute_dtype=jnp.bfloat16)
    out_bf16 = jax.block_until_ready(out_bf16)
    assert jnp.allclose(out_bf16, ref, rtol=5e-2, atol=1e-2), float(
        jnp.max(jnp.abs(out_bf16 - ref)))

    # 3) general fallback path (stride != ks): ks=3, stride=1, f32
    ks2, st2 = 3, 1
    weight2 = 0.1 * jax.random.normal(k_w2, (Cin, Cout, ks2, ks2, ks2),
                                      dtype=jnp.float32)
    out_gen = basic_deconvolution_block(
        x, weight2, gamma, beta, running_mean, running_var,
        ks=ks2, stride=st2, compute_dtype=jnp.float32)
    out_gen = jax.block_until_ready(out_gen)
    ref_gen = _reference(x, weight2, gamma, beta, running_mean, running_var,
                         ks=ks2, stride=st2)
    assert out_gen.shape == ref_gen.shape, out_gen.shape
    assert jnp.allclose(out_gen, ref_gen, rtol=1e-4, atol=1e-4), float(
        jnp.max(jnp.abs(out_gen - ref_gen)))

    print("KERNEL_OK")
</pallas_src>

<mosaic_0001>
module attributes {stable_mosaic.version = 11 : i64} {
  func.func @_wx_shift_relu_kernel(%arg0: i32, %arg1: i32, %arg2: memref<64x4xf32, #tpu.memory_space<vmem>>, %arg3: memref<1x4x128xf32, #tpu.memory_space<vmem>>, %arg4: memref<64x1xf32, #tpu.memory_space<vmem>>, %arg5: memref<1x64x128xf32, #tpu.memory_space<vmem>>) attributes {dimension_semantics = [#tpu.dimension_semantics<parallel>, #tpu.dimension_semantics<parallel>], iteration_bounds = array<i64: 2, 1>, scalar_prefetch = 0 : i64, scratch_operands = 0 : i64, tpu.core_type = #tpu.core_type<tc>, window_params = [{pipeline_mode = #tpu.pipeline_mode<synchronous>, transform_indices = @transform_0, window_bounds = array<i64: 64, 4>}, {transform_indices = @transform_1, window_bounds = array<i64: 1, 4, 128>}, {pipeline_mode = #tpu.pipeline_mode<synchronous>, transform_indices = @transform_2, window_bounds = array<i64: 64, 1>}, {transform_indices = @transform_3, window_bounds = array<i64: 1, 64, 128>}]} {
    %c0 = arith.constant 0 : index
    %c0_0 = arith.constant 0 : index
    %0 = vector.load %arg2[%c0, %c0_0] : memref<64x4xf32, #tpu.memory_space<vmem>>, vector<64x4xf32>
    %c0_1 = arith.constant 0 : index
    %c0_2 = arith.constant 0 : index
    %c0_3 = arith.constant 0 : index
    %1 = vector.load %arg3[%c0_1, %c0_2, %c0_3] : memref<1x4x128xf32, #tpu.memory_space<vmem>>, vector<1x4x128xf32>
    %2 = vector.shape_cast %1 : vector<1x4x128xf32> to vector<4x128xf32>
    %cst = arith.constant dense<0.000000e+00> : vector<64x128xf32>
    %3 = tpu.matmul %0, %2, %cst {dimension_numbers = #tpu.dot_dimension_numbers<[1], [0], [0], [1], [0, 0, 1, 1], [], []>} : vector<64x4xf32>, vector<4x128xf32>, vector<64x128xf32> -> vector<64x128xf32>
    %c0_4 = arith.constant 0 : index
    %c0_5 = arith.constant 0 : index
    %4 = vector.load %arg4[%c0_4, %c0_5] : memref<64x1xf32, #tpu.memory_space<vmem>>, vector<64x1xf32>
    %5 = vector.broadcast %4 : vector<64x1xf32> to vector<64x128xf32>
    %6 = arith.addf %3, %5 : vector<64x128xf32>
    %cst_6 = arith.constant 0.000000e+00 : f32
    %7 = vector.broadcast %cst_6 : f32 to vector<64x128xf32>
    %8 = arith.maximumf %6, %7 : vector<64x128xf32>
    %c0_7 = arith.constant 0 : index
    %c0_8 = arith.constant 0 : index
    %c0_9 = arith.constant 0 : index
    %9 = vector.load %arg5[%c0_7, %c0_8, %c0_9] : memref<1x64x128xf32, #tpu.memory_space<vmem>>, vector<1x64x128xf32>
    %10 = vector.shape_cast %9 : vector<1x64x128xf32> to vector<64x128xf32>
    %11 = vector.shape_cast %8 : vector<64x128xf32> to vector<1x64x128xf32>
    tpu.vector_store %arg5[%c0_7, %c0_8, %c0_9], %11 {strides = array<i32>} : memref<1x64x128xf32, #tpu.memory_space<vmem>>, vector<1x64x128xf32>,
    return
  }
  func.func @transform_0(%arg0: i32, %arg1: i32) -> (i32, i32) {
    %c0_i32 = arith.constant 0 : i32
    %c0_i32_0 = arith.constant 0 : i32
    %c0_i32_1 = arith.constant 0 : i32
    return %c0_i32, %c0_i32_0 : i32, i32
  }
  func.func @transform_1(%arg0: i32, %arg1: i32) -> (i32, i32, i32) {
    %c0_i32 = arith.constant 0 : i32
    %c0_i32_0 = arith.constant 0 : i32
    return %arg0, %c0_i32, %arg1 : i32, i32, i32
  }
  func.func @transform_2(%arg0: i32, %arg1: i32) -> (i32, i32) {
    %c0_i32 = arith.constant 0 : i32
    %c0_i32_0 = arith.constant 0 : i32
    %c0_i32_1 = arith.constant 0 : i32
    return %c0_i32, %c0_i32_0 : i32, i32
  }
  func.func @transform_3(%arg0: i32, %arg1: i32) -> (i32, i32, i32) {
    %c0_i32 = arith.constant 0 : i32
    %c0_i32_0 = arith.constant 0 : i32
    return %arg0, %c0_i32, %arg1 : i32, i32, i32
  }
}

</mosaic_0001>

<llo_original>
// kernel: tpu_custom_call.1
$region0: #{tpu_custom_call.1}
  #allocation0 [shape = 'u32[]', space=smem, size = 0x4, offset = 0x4, fixed_abs, tag = 'smem constant byte address 0x4 - core index']
  #allocation1 [shape = 'u32[144,128]{1,0:T(1,128)}', space=vmem, size = 0x12000, scoped, tag = 'internal scratch']
  %s0 = inlined_call_operand.hbm [shape: f32[64,4], index: 0, kind: input, shape index: {}]
  %s1 = inlined_call_operand.hbm [shape: f32[2,4,128], index: 1, kind: input, shape index: {}]
  %s2 = inlined_call_operand.hbm [shape: f32[64,1], index: 2, kind: input, shape index: {}]
  %s3 = inlined_call_operand.hbm [shape: f32[2,64,128], index: 3, kind: output, shape index: {}]
  %s4 = sld [smem:[#allocation0]]
  $region57: #{tpu_custom_call.1} parent=0
    _
  %s6 = ssub.s32 1, %s4
  %s7 = scalar_select 0, %s6, %s4
  $region1: #{tpu_custom_call.1} parent=0
    #allocation2 [shape = 'u8[32768]{0}', space=vmem, size = 0x8000, scoped, tag = 'input window, operand 0, single buffered']
    #allocation3 [shape = 's32[2]{0}', space=sflag, size = 0x8, scoped, tag = 'scoped memory for tpu_custom_call.1']
    #allocation4 [shape = 's32[2]{0}', space=sflag, size = 0x8, scoped, tag = 'scoped memory for tpu_custom_call.1']
    #allocation5 [shape = 'u8[4096]{0}', space=vmem, size = 0x1000, scoped, tag = 'input window, operand 1']
    #allocation6 [shape = 's32[2]{0}', space=sflag, size = 0x8, scoped, tag = 'scoped memory for tpu_custom_call.1']
    #allocation7 [shape = 'u8[32768]{0}', space=vmem, size = 0x8000, scoped, tag = 'input window, operand 2, single buffered']
    #allocation8 [shape = 'u8[65536]{0}', space=vmem, size = 0x10000, scoped, tag = 'output window, operand 0']
    %8 = vsyncpa [#allocation3], 0
    %9 = vsyncpa [#allocation6], 0
    %s10 = scalar_lea.sflag [#allocation6], 1
    %11 = vsyncpa %s10, 0
    %12 = vsyncpa [#allocation4], 0
    %s13 = scalar_lea.sflag [#allocation4], 1
    %14 = vsyncpa %s13, 0
    loop: start=0, step=1, limit=4
    $region2: #{tpu_custom_call.1} parent=1 // loop_pre_header
      _
    $region3: #{tpu_custom_call.1} parent=1 // loop_header
      %s16 = sphi 0, %s20
      %p17 = scmp.ge.s32.totalorder %s16, 4
      %s23 = sphi 0, %s35
      %s24 = sphi 0, %s31
      %s25 = sphi 0, %s23
      %s26 = sphi 0, %s24
      %s27 = sphi 0, %s25
      %s28 = sphi 0, %s26
      %s36 = sphi 0, %s36
      %s38 = sphi 0, %s36
      %s39 = sphi 0, %s38
      %s53 = sphi 0, %s39
      %s61 = sphi 0, %s63
      %s64 = sphi 0, %s61
      %s65 = sphi 0, %s64
      %s81 = sphi 0, %s65
      %s85 = sphi 0, %s85
      %s87 = sphi 0, %s85
      %s88 = sphi 0, %s87
      %s102 = sphi 0, %s88
      %s110 = sphi 0, %s112
      %s113 = sphi 0, %s110
      %s114 = sphi 0, %s113
      %s130 = sphi 0, %s114
    $region4: #{tpu_custom_call.1} parent=1 // loop_header_branch
      %19 = sbr.rel (%p17) target = $region8
    $region5: #{tpu_custom_call.1} parent=1 // loop_body
      %s21 = ssub.s32 %s16, 1
      %s22 = ssub.s32 %s16, 2
      %s29 = sadd.s32 1, %s24
      %p30 = scmp.ge.s32.totalorder %s29, 1
      %s31 = scalar_select %p30, 0, %s29
      %s32 = sadd.s32 1, %s23
      %s33 = scalar_select %p30, %s32, %s23
      %p34 = scmp.ge.s32.totalorder %s33, 2
      %s35 = scalar_select %p34, 0, %s33
      %s37 = sadd.s32 %s36, 1
      %p40 = scmp.eq.s32.totalorder %s16, 1
      %p41 = scmp.ne.s32.totalorder %s36, %s38
      %p42 = scmp.eq.s32.totalorder %s16, 0
      %p43 = por %p41, %p42
      %p44 = scmp.ne.s32.totalorder %s36, %s38
      %p45 = scmp.eq.s32.totalorder %s21, 1
      %p46 = por %p44, %p45
      %p47 = scmp.ne.s32.totalorder %s38, %s39
      %p48 = scmp.eq.s32.totalorder %s21, 0
      %p49 = por %p47, %p48
      %p50 = scmp.ne.s32.totalorder %s38, %s39
      %p51 = scmp.eq.s32.totalorder %s22, 1
      %p52 = por %p50, %p51
      %p54 = scmp.ne.s32.totalorder %s39, %s53
      %p55 = scmp.eq.s32.totalorder %s22, 0
      %p56 = por %p54, %p55
      %s57 = ssub.s32 %s23, %s35
      %s58 = ssub.s32 %s24, %s31
      %s59 = sor.u32 %s57, %s58
      %p60 = scmp.eq.s32.totalorder %s59, 0
      %s62 = sadd.s32 %s61, 1
      %s63 = scalar_select %p60, %s61, %s62
      %p66 = pneg %p60
      %p67 = scmp.eq.s32.totalorder %s16, 1
      %p68 = por %p66, %p67
      %p69 = scmp.ne.s32.totalorder %s61, %s64
      %p70 = scmp.eq.s32.totalorder %s16, 0
      %p71 = por %p69, %p70
      %p72 = scmp.ne.s32.totalorder %s61, %s64
      %p73 = scmp.eq.s32.totalorder %s21, 1
      %p74 = por %p72, %p73
      %p75 = scmp.ne.s32.totalorder %s64, %s65
      %p76 = scmp.eq.s32.totalorder %s21, 0
      %p77 = por %p75, %p76
      %p78 = scmp.ne.s32.totalorder %s64, %s65
      %p79 = scmp.eq.s32.totalorder %s22, 1
      %p80 = por %p78, %p79
      %p82 = scmp.ne.s32.totalorder %s65, %s81
      %p83 = scmp.eq.s32.totalorder %s22, 0
      %p84 = por %p82, %p83
      %s86 = sadd.s32 %s85, 1
      %p89 = scmp.eq.s32.totalorder %s16, 1
      %p90 = scmp.ne.s32.totalorder %s85, %s87
      %p91 = scmp.eq.s32.totalorder %s16, 0
      %p92 = por %p90, %p91
      %p93 = scmp.ne.s32.totalorder %s85, %s87
      %p94 = scmp.eq.s32.totalorder %s21, 1
      %p95 = por %p93, %p94
      %p96 = scmp.ne.s32.totalorder %s87, %s88
      %p97 = scmp.eq.s32.totalorder %s21, 0
      %p98 = por %p96, %p97
      %p99 = scmp.ne.s32.totalorder %s87, %s88
      %p100 = scmp.eq.s32.totalorder %s22, 1
      %p101 = por %p99, %p100
      %p103 = scmp.ne.s32.totalorder %s88, %s102
      %p104 = scmp.eq.s32.totalorder %s22, 0
      %p105 = por %p103, %p104
      %s106 = ssub.s32 %s23, %s35
      %s107 = ssub.s32 %s24, %s31
      %s108 = sor.u32 %s106, %s107
      %p109 = scmp.eq.s32.totalorder %s108, 0
      %s111 = sadd.s32 %s110, 1
      %s112 = scalar_select %p109, %s110, %s111
      %p115 = pneg %p109
      %p116 = scmp.eq.s32.totalorder %s16, 1
      %p117 = por %p115, %p116
      %p118 = scmp.ne.s32.totalorder %s110, %s113
      %p119 = scmp.eq.s32.totalorder %s16, 0
      %p120 = por %p118, %p119
      %p121 = scmp.ne.s32.totalorder %s110, %s113
      %p122 = scmp.eq.s32.totalorder %s21, 1
      %p123 = por %p121, %p122
      %p124 = scmp.ne.s32.totalorder %s113, %s114
      %p125 = scmp.eq.s32.totalorder %s21, 0
      %p126 = por %p124, %p125
      %p127 = scmp.ne.s32.totalorder %s113, %s114
      %p128 = scmp.eq.s32.totalorder %s22, 1
      %p129 = por %p127, %p128
      %p131 = scmp.ne.s32.totalorder %s114, %s130
      %p132 = scmp.eq.s32.totalorder %s22, 0
      %p133 = por %p131, %p132
      %p134 = scmp.le.s32.totalorder 1, %s16
      %p135 = scmp.lt.s32.totalorder %s16, 3
      %p136 = pnand %p134, %p135
      %p137 = pneg %p136
      // Predicated region
      $region9: #{tpu_custom_call.1} parent=5 // pred_check
        _
      $region10: #{tpu_custom_call.1} parent=5 // pred_check_branch
        %139 = sbr.rel (%p136) target = $region12
      $region11: #{tpu_custom_call.1} parent=5 // pred_region
        %s140 = ssub.s32 %s16, 1
        // Predicated region
        $region13: #{tpu_custom_call.1} parent=11 // pred_check
          %p141 = pneg %p49
        $region14: #{tpu_custom_call.1} parent=11 // pred_check_branch
          %143 = sbr.rel (%p141) target = $region16
        $region15: #{tpu_custom_call.1} parent=11 // pred_region
          %s145 = ssub.s32 1024, 1024
          %146 = vsyncadd [#allocation3], %s145
          %s147 = sshll.u32 [#allocation2], 4
          %s148 = int_to_ptr.vmem [resolvable:$true] %s147
          %153 = dma.hbm_to_vmem [thread:$0]  %s0, 1024, %s148, [#allocation3], 128, 128, 8
        $region16: #{tpu_custom_call.1} parent=11 // pred_fallthru
          _
        // Predicated region
        $region17: #{tpu_custom_call.1} parent=11 // pred_check
          %p154 = pneg %p98
        $region18: #{tpu_custom_call.1} parent=11 // pred_check_branch
          %156 = sbr.rel (%p154) target = $region20
        $region19: #{tpu_custom_call.1} parent=11 // pred_region
          %s158 = ssub.s32 1024, 1024
          %159 = vsyncadd [#allocation6], %s158
          %s160 = sshll.u32 [#allocation7], 4
          %s161 = int_to_ptr.vmem [resolvable:$true] %s160
          %166 = dma.hbm_to_vmem [thread:$0]  %s2, 1024, %s161, [#allocation6], 128, 128, 8
        $region20: #{tpu_custom_call.1} parent=11 // pred_fallthru
          _
      $region12: #{tpu_custom_call.1} parent=5 // pred_fallthru
        _
      %p167 = scmp.lt.s32.totalorder %s16, 2
      // Predicated region
      $region21: #{tpu_custom_call.1} parent=5 // pred_check
        %p168 = pneg %p167
      $region22: #{tpu_custom_call.1} parent=5 // pred_check_branch
        %170 = sbr.rel (%p168) target = $region24
      $region23: #{tpu_custom_call.1} parent=5 // pred_region
        // Predicated region
        $region25: #{tpu_custom_call.1} parent=23 // pred_check
          %p171 = pneg %p71
        $region26: #{tpu_custom_call.1} parent=23 // pred_check_branch
          %173 = sbr.rel (%p171) target = $region28
        $region27: #{tpu_custom_call.1} parent=23 // pred_region
          %s174 = sand.u32 %s16, 1
          %s175 = scalar_lea.sflag [#allocation6], %s174
          %s176 = sand.u32 %s61, 1
          %s177 = smul.addr %s176, 4
          %s178 = scalar_lea.vmem [#allocation5], %s177
          %s180 = ssub.s32 64, 64
          %181 = vsyncadd %s175, %s180
          %s182 = sadd.s32 %s24, %s23
          %s183 = smul.addr %s182, 64
          %s184 = scalar_lea.hbm %s1, %s183
          %s186 = sshll.u32 %s178, 4
          %s187 = int_to_ptr.vmem [resolvable:$true] %s186
          %189 = dma.hbm_to_vmem [thread:$0]  %s184, 64, %s187, %s175
        $region28: #{tpu_custom_call.1} parent=23 // pred_fallthru
          _
      $region24: #{tpu_custom_call.1} parent=5 // pred_fallthru
        _
      %p190 = scmp.le.s32.totalorder 1, %s16
      %p191 = scmp.lt.s32.totalorder %s16, 3
      %p192 = pnand %p190, %p191
      %p193 = pneg %p192
      // Predicated region
      $region29: #{tpu_custom_call.1} parent=5 // pred_check
        _
      $region30: #{tpu_custom_call.1} parent=5 // pred_check_branch
        %195 = sbr.rel (%p192) target = $region32
      $region31: #{tpu_custom_call.1} parent=5 // pred_region
        %s196 = ssub.s32 %s16, 1
        // Predicated region
        $region33: #{tpu_custom_call.1} parent=31 // pred_check
          %p197 = pneg %p49
        $region34: #{tpu_custom_call.1} parent=31 // pred_check_branch
          %199 = sbr.rel (%p197) target = $region36
        $region35: #{tpu_custom_call.1} parent=31 // pred_region
          %200 = dma.done [#allocation3], 1024
        $region36: #{tpu_custom_call.1} parent=31 // pred_fallthru
          _
        %s201 = sand.u32 %s21, 1
        %s202 = scalar_lea.sflag [#allocation6], %s201
        %s203 = sand.u32 %s64, 1
        %s204 = smul.addr %s203, 4
        %s205 = scalar_lea.vmem [#allocation5], %s204
        // Predicated region
        $region37: #{tpu_custom_call.1} parent=31 // pred_check
          %p206 = pneg %p77
        $region38: #{tpu_custom_call.1} parent=31 // pred_check_branch
          %208 = sbr.rel (%p206) target = $region40
        $region39: #{tpu_custom_call.1} parent=31 // pred_region
          %209 = dma.done %s202, 64
        $region40: #{tpu_custom_call.1} parent=31 // pred_fallthru
          _
        // Predicated region
        $region41: #{tpu_custom_call.1} parent=31 // pred_check
          %p210 = pneg %p98
        $region42: #{tpu_custom_call.1} parent=31 // pred_check_branch
          %212 = sbr.rel (%p210) target = $region44
        $region43: #{tpu_custom_call.1} parent=31 // pred_region
          %213 = dma.done [#allocation6], 1024
        $region44: #{tpu_custom_call.1} parent=31 // pred_fallthru
          _
        %p214 = pneg %p49
        %p215 = pneg %p46
        %s216 = sand.u32 %s21, 1
        %s217 = scalar_lea.sflag [#allocation6], %s216
        %s218 = sand.u32 %s64, 1
        %s219 = smul.addr %s218, 4
        %s220 = scalar_lea.vmem [#allocation5], %s219
        %p221 = pneg %p77
        %p222 = pneg %p74
        %p223 = pneg %p98
        %p224 = pneg %p95
        %p225 = pneg %p126
        %p226 = pneg %p123
        %s227 = sand.u32 %s113, 1
        %s228 = scalar_lea.sflag [#allocation4], %s227
        %s229 = sand.u32 %s113, 1
        %s230 = smul.addr %s229, 64
        %s231 = scalar_lea.vmem [#allocation8], %s230
        %v232 = vld [vmem:[#allocation2] sm:$0xff]
        %v233 = vld [vmem:[#allocation2 + $0x8] sm:$0xff]
        %v234 = vld [vmem:[#allocation2 + $0x10] sm:$0xff]
        %v235 = vld [vmem:[#allocation2 + $0x18] sm:$0xff]
        %v236 = vld [vmem:[#allocation2 + $0x20] sm:$0xff]
        %v237 = vld [vmem:[#allocation2 + $0x28] sm:$0xff]
        %v238 = vld [vmem:[#allocation2 + $0x30] sm:$0xff]
        %v239 = vld [vmem:[#allocation2 + $0x38] sm:$0xff]
        %v240 = vld [vmem:[%s205] sm:$0xf]
        %v241 = vld [vmem:[#allocation7] sm:$0xff]
        %v242 = vld [vmem:[#allocation7 + $0x8] sm:$0xff]
        %v243 = vld [vmem:[#allocation7 + $0x10] sm:$0xff]
        %v244 = vld [vmem:[#allocation7 + $0x18] sm:$0xff]
        %v245 = vld [vmem:[#allocation7 + $0x20] sm:$0xff]
        %v246 = vld [vmem:[#allocation7 + $0x28] sm:$0xff]
        %v247 = vld [vmem:[#allocation7 + $0x30] sm:$0xff]
        %v248 = vld [vmem:[#allocation7 + $0x38] sm:$0xff]
        %250 = vset.pattern.permute.xlu0 0
        %251 = vperm.xlu0 %250, %v241
        %v252 = vpop.permute.xlu0 %251
        %255 = vset.pattern.permute.xlu0 0
        %256 = vperm.xlu0 %255, %v242
        %v257 = vpop.permute.xlu0 %256
        %260 = vset.pattern.permute.xlu0 0
        %261 = vperm.xlu0 %260, %v243
        %v262 = vpop.permute.xlu0 %261
        %265 = vset.pattern.permute.xlu0 0
        %266 = vperm.xlu0 %265, %v244
        %v267 = vpop.permute.xlu0 %266
        %270 = vset.pattern.permute.xlu0 0
        %271 = vperm.xlu0 %270, %v245
        %v272 = vpop.permute.xlu0 %271
        %275 = vset.pattern.permute.xlu0 0
        %276 = vperm.xlu0 %275, %v246
        %v277 = vpop.permute.xlu0 %276
        %280 = vset.pattern.permute.xlu0 0
        %281 = vperm.xlu0 %280, %v247
        %v282 = vpop.permute.xlu0 %281
        %285 = vset.pattern.permute.xlu0 0
        %286 = vperm.xlu0 %285, %v248
        %v287 = vpop.permute.xlu0 %286
        %vm289 = vcmask 31744
        %v291 = vsel %vm289, %v232, 0
        %v294 = vsel %vm289, %v233, 0
        %v297 = vsel %vm289, %v234, 0
        %v300 = vsel %vm289, %v235, 0
        %v303 = vsel %vm289, %v236, 0
        %v306 = vsel %vm289, %v237, 0
        %v309 = vsel %vm289, %v238, 0
        %v312 = vsel %vm289, %v239, 0
        %vm314 = vcmask 1043456
        %v316 = vsel %vm314, %v240, 0
        %318 = vmatprep.subr.mxu0 0.0
        %319 = vmatpush1.msra.mxu0 %v316
        %320 = vmatprep.subr.mxu0 0.0
        %321 = vmatpush1.msra.mxu0 0.0
        %322 = vmatprep.subr.mxu0 0.0
        %323 = vmatpush1.msra.mxu0 0.0
        %324 = vmatprep.subr.mxu0 0.0
        %325 = vmatpush1.msra.mxu0 0.0
        %326 = vmatprep.subr.mxu0 0.0
        %327 = vmatpush1.msra.mxu0 0.0
        %328 = vmatprep.subr.mxu0 0.0
        %329 = vmatpush1.msra.mxu0 0.0
        %330 = vmatprep.subr.mxu0 0.0
        %331 = vmatpush1.msra.mxu0 0.0
        %332 = vmatprep.subr.mxu0 0.0
        %333 = vmatpush1.msra.mxu0 0.0
        %334 = vmatprep.subr.mxu0 0.0
        %335 = vmatpush1.msra.mxu0 0.0
        %336 = vmatprep.subr.mxu0 0.0
        %337 = vmatpush1.msra.mxu0 0.0
        %338 = vmatprep.subr.mxu0 0.0
        %339 = vmatpush1.msra.mxu0 0.0
        %340 = vmatprep.subr.mxu0 0.0
        %341 = vmatpush1.msra.mxu0 0.0
        %342 = vmatprep.subr.mxu0 0.0
        %343 = vmatpush1.msra.mxu0 0.0
        %344 = vmatprep.subr.mxu0 0.0
        %345 = vmatpush1.msra.mxu0 0.0
        %346 = vmatprep.subr.mxu0 0.0
        %347 = vmatpush1.msra.mxu0 0.0
        %348 = vmatprep.subr.mxu0 0.0
        %349 = vmatpush1.msra.mxu0 0.0
        %350 = vmatprep.subr.mxu0 0.0
        %351 = vmatpush1.msra.mxu0 0.0
        %352 = vmatprep.subr.mxu0 0.0
        %353 = vmatpush1.msra.mxu0 0.0
        %354 = vmatprep.subr.mxu0 0.0
        %355 = vmatpush1.msra.mxu0 0.0
        %356 = vmatprep.subr.mxu0 0.0
        %357 = vmatpush1.msra.mxu0 0.0
        %358 = vmatprep.subr.mxu0 0.0
        %359 = vmatpush1.msra.mxu0 0.0
        %360 = vmatprep.subr.mxu0 0.0
        %361 = vmatpush1.msra.mxu0 0.0
        %362 = vmatprep.subr.mxu0 0.0
        %363 = vmatpush1.msra.mxu0 0.0
        %364 = vmatprep.subr.mxu0 0.0
        %365 = vmatpush1.msra.mxu0 0.0
        %366 = vmatprep.subr.mxu0 0.0
        %367 = vmatpush1.msra.mxu0 0.0
        %368 = vmatprep.subr.mxu0 0.0
        %369 = vmatpush1.msra.mxu0 0.0
        %370 = vmatprep.subr.mxu0 0.0
        %371 = vmatpush1.msra.mxu0 0.0
        %372 = vmatprep.subr.mxu0 0.0
        %373 = vmatpush1.msra.mxu0 0.0
        %374 = vmatprep.subr.mxu0 0.0
        %375 = vmatpush1.msra.mxu0 0.0
        %376 = vmatprep.subr.mxu0 0.0
        %377 = vmatpush1.msra.mxu0 0.0
        %378 = vmatprep.subr.mxu0 0.0
        %379 = vmatpush1.msra.mxu0 0.0
        %380 = vmatprep.subr.mxu0 0.0
        %381 = vmatpush1.msra.mxu0 0.0
        %382 = vmatprep.mubr.f32.mxu0 0.0
        %383 = vmatmul.mubr.f32.gmra.mrb[0].mxu0 %v291
        %v384 = vpop.f32.mrb[0].mxu0
        %v385 = vadd.f32 %v252, %v384
        %v386 = vpop.f32.mrb[0].mxu0
        %387 = vmatprep.mubr.f32.mxu0 0.0
        %388 = vmatmul.mubr.f32.gmra.mrb[0].mxu0 %v294
        %v389 = vpop.f32.mrb[0].mxu0
        %v390 = vadd.f32 %v257, %v389
        %v391 = vpop.f32.mrb[0].mxu0
        %392 = vmatprep.mubr.f32.mxu0 0.0
        %393 = vmatmul.mubr.f32.gmra.mrb[0].mxu0 %v297
        %v394 = vpop.f32.mrb[0].mxu0
        %v395 = vadd.f32 %v262, %v394
        %v396 = vpop.f32.mrb[0].mxu0
        %397 = vmatprep.mubr.f32.mxu0 0.0
        %398 = vmatmul.mubr.f32.gmra.mrb[0].mxu0 %v300
        %v399 = vpop.f32.mrb[0].mxu0
        %v400 = vadd.f32 %v267, %v399
        %v401 = vpop.f32.mrb[0].mxu0
        %402 = vmatprep.mubr.f32.mxu0 0.0
        %403 = vmatmul.mubr.f32.gmra.mrb[0].mxu0 %v303
        %v404 = vpop.f32.mrb[0].mxu0
        %v405 = vadd.f32 %v272, %v404
        %v406 = vpop.f32.mrb[0].mxu0
        %407 = vmatprep.mubr.f32.mxu0 0.0
        %408 = vmatmul.mubr.f32.gmra.mrb[0].mxu0 %v306
        %v409 = vpop.f32.mrb[0].mxu0
        %v410 = vadd.f32 %v277, %v409
        %v411 = vpop.f32.mrb[0].mxu0
        %412 = vmatprep.mubr.f32.mxu0 0.0
        %413 = vmatmul.mubr.f32.gmra.mrb[0].mxu0 %v309
        %v414 = vpop.f32.mrb[0].mxu0
        %v415 = vadd.f32 %v282, %v414
        %v416 = vpop.f32.mrb[0].mxu0
        %417 = vmatprep.mubr.f32.mxu0 0.0
        %418 = vmatmul.mubr.f32.gmra.mrb[0].mxu0 %v312
        %v419 = vpop.f32.mrb[0].mxu0
        %v420 = vadd.f32 %v287, %v419
        %v421 = vpop.f32.mrb[0].mxu0
        %422 = vdwg.mxu0
        %v423 = vmax.f32 %v385, 0.0
        %v424 = vmax.f32 %v390, 0.0
        %v425 = vmax.f32 %v395, 0.0
        %v426 = vmax.f32 %v400, 0.0
        %v427 = vmax.f32 %v405, 0.0
        %v428 = vmax.f32 %v410, 0.0
        %v429 = vmax.f32 %v415, 0.0
        %v430 = vmax.f32 %v420, 0.0
        %431 = vst [vmem:[%s231] sm:$0xff] %v423
        %432 = vst [vmem:[%s231 + $0x8] sm:$0xff] %v424
        %433 = vst [vmem:[%s231 + $0x10] sm:$0xff] %v425
        %434 = vst [vmem:[%s231 + $0x18] sm:$0xff] %v426
        %435 = vst [vmem:[%s231 + $0x20] sm:$0xff] %v427
        %436 = vst [vmem:[%s231 + $0x28] sm:$0xff] %v428
        %437 = vst [vmem:[%s231 + $0x30] sm:$0xff] %v429
        %438 = vst [vmem:[%s231 + $0x38] sm:$0xff] %v430
        %s439 = sand.u32 %s113, 1
        %s440 = scalar_lea.sflag [#allocation4], %s439
        %s441 = sand.u32 %s113, 1
        %s442 = smul.addr %s441, 64
        %s443 = scalar_lea.vmem [#allocation8], %s442
        // Predicated region
        $region45: #{tpu_custom_call.1} parent=31 // pred_check
          %p444 = pneg %p123
        $region46: #{tpu_custom_call.1} parent=31 // pred_check_branch
          %446 = sbr.rel (%p444) target = $region48
        $region47: #{tpu_custom_call.1} parent=31 // pred_region
          %s448 = ssub.s32 1024, 1024
          %449 = vsyncadd %s440, %s448
          %s450 = smul.addr %s25, 8
          %s451 = sadd.s32 %s26, %s450
          %s452 = smul.addr %s451, 128
          %s453 = scalar_lea.hbm %s3, %s452
          %s454 = sshll.u32 %s443, 4
          %s455 = int_to_ptr.vmem [resolvable:$true] %s454
          %460 = dma.vmem_to_hbm [thread:$0]  %s455, 1024, %s453, %s440, 128, 128, 8
        $region48: #{tpu_custom_call.1} parent=31 // pred_fallthru
          _
      $region32: #{tpu_custom_call.1} parent=5 // pred_fallthru
        _
      %p461 = scmp.le.s32.totalorder 2, %s16
      // Predicated region
      $region49: #{tpu_custom_call.1} parent=5 // pred_check
        %p462 = pneg %p461
      $region50: #{tpu_custom_call.1} parent=5 // pred_check_branch
        %464 = sbr.rel (%p462) target = $region52
      $region51: #{tpu_custom_call.1} parent=5 // pred_region
        %s465 = ssub.s32 %s16, 2
        // Predicated region
        $region53: #{tpu_custom_call.1} parent=51 // pred_check
          %p466 = pneg %p129
        $region54: #{tpu_custom_call.1} parent=51 // pred_check_branch
          %468 = sbr.rel (%p466) target = $region56
        $region55: #{tpu_custom_call.1} parent=51 // pred_region
          %s469 = sand.u32 %s114, 1
          %s470 = scalar_lea.sflag [#allocation4], %s469
          %s471 = sand.u32 %s114, 1
          %s472 = smul.addr %s471, 64
          %s473 = scalar_lea.vmem [#allocation8], %s472
          %474 = dma.done %s470, 1024
        $region56: #{tpu_custom_call.1} parent=51 // pred_fallthru
          _
      $region52: #{tpu_custom_call.1} parent=5 // pred_fallthru
        _
    $region6: #{tpu_custom_call.1} parent=1 // loop_footer
      %s20 = sadd.s32 1, %s16
    $region7: #{tpu_custom_call.1} parent=1 // loop_footer_branch
      %15 = sbr.rel target = $region3
    $region8: #{tpu_custom_call.1} parent=1 // loop_exit
      _
    %475 = vsyncpa [#allocation3], 1
    %s476 = scalar_lea.sflag [#allocation3], 1
    %477 = vsyncpa %s476, 1
    %478 = vsyncpa [#allocation6], 1
    %s479 = scalar_lea.sflag [#allocation6], 1
    %480 = vsyncpa %s479, 1
    %481 = vsyncpa [#allocation4], 1
    %s482 = scalar_lea.sflag [#allocation4], 1
    %483 = vsyncpa %s482, 1

</llo_original>
